<compile_context>
chip_gen: v7x
topology: tpu7x:2x2x1
jax: 0.10.0
libtpu: 0.0.40
codegen_flags: <defaults>
</compile_context>

<pallas_src>
import functools

import jax
import jax.numpy as jnp
import numpy as np
from jax.experimental import pallas as pl
from jax.experimental.pallas import tpu as pltpu


def _vmem():
    return pl.BlockSpec(memory_space=pltpu.MemorySpace.VMEM)


def _round_up(x, m=128):
    return -(-x // m) * m


# --------------------------------------------------------------------------- #
# One-shot setup kernel: packed [encoder_outputs | enc @ w_attn_enc + b_attn]. #
# --------------------------------------------------------------------------- #
def _enc_pack_kernel(enc_ref, w_ref, b_ref, out_ref):
    f32 = jnp.float32
    enc = enc_ref[...]                                        # (B, L, C)
    B, L, C = enc.shape
    Hd = w_ref.shape[1]
    proj = jnp.dot(enc.reshape(B * L, C), w_ref[...],
                   preferred_element_type=f32)                # (B*L, H)
    proj = proj.reshape(B, L, Hd) + b_ref[...]                # + b_attn folded here
    pad = out_ref.shape[-1] - (C + Hd)
    pieces = [enc, proj]
    if pad > 0:
        pieces.append(jnp.zeros((B, L, pad), f32))
    out_ref[...] = jnp.concatenate(pieces, axis=-1)           # (B, L, 128)


# --------------------------------------------------------------------------- #
# Shared per-step math (used by both the single-step and fused kernels).      #
# --------------------------------------------------------------------------- #
def _step_math(ids, h_prev, enc_slab, w_slab_ref, w_rnn_ref, vec_ref,
               *, C, E, Hd, O, out_width):
    f32 = jnp.float32
    B = h_prev.shape[0]
    L = enc_slab.shape[1]

    enc = enc_slab[:, :, :C]                                  # (B, L, C)
    encp = enc_slab[:, :, C:C + Hd]                           # (B, L, H) precomputed proj

    vec = vec_ref[...]                                        # (4, 128)
    v = vec[0:1, :Hd]                                         # (1, H)
    b_ih = vec[1:2, :3 * Hd]                                  # (1, 3H)
    b_hh = vec[2:3, :3 * Hd]                                  # (1, 3H)
    b_out = vec[3:4, :O]                                      # (1, O)

    w_slab = w_slab_ref[...]                                  # (H, 4H + O)
    w_h_fused = w_slab[:, :4 * Hd]                            # [attn_h | w_hh]
    w_out = w_slab[:, 4 * Hd:4 * Hd + O]

    # ---- fused h_prev matmul: columns = [attn_h_term | gh_r | gh_z | gh_n] ----
    h_fused = jnp.dot(h_prev, w_h_fused, preferred_element_type=f32)   # (B, 4H)
    h_term = h_fused[:, :Hd]                                  # attention hidden term
    gh = h_fused[:, Hd:] + b_hh                               # (B, 3H) GRU hidden gates

    # ---- attention: enc projection precomputed; only add/tanh/v-dot/softmax ----
    energy = jnp.tanh(encp + h_term[:, None, :])              # (B, L, H)
    scores = jnp.sum(energy * v[:, None, :], axis=-1)         # (B, L)
    m = jnp.max(scores, axis=-1, keepdims=True)
    p = jnp.exp(scores - m)
    attn = p / jnp.sum(p, axis=-1, keepdims=True)             # exact softmax

    # ---- context = attn_weights bmm encoder_outputs ----
    context = jnp.sum(attn[:, :, None] * enc, axis=1)         # (B, C)

    # ---- word path: one-hot MXU dot against folded [word | context] GRU weight ----
    onehot = (jax.lax.broadcasted_iota(jnp.int32, (B, E), 1) == ids).astype(f32)
    rnn_in = jnp.concatenate([onehot, context], axis=-1)      # (B, E + C)
    gi = jnp.dot(rnn_in, w_rnn_ref[...], preferred_element_type=f32) + b_ih  # (B, 3H)

    # ---- GRUCell (full-width gate sum once; only n-gate needs separate slices) ----
    s = gi + gh
    r = jax.nn.sigmoid(s[:, :Hd])
    z = jax.nn.sigmoid(s[:, Hd:2 * Hd])
    n = jnp.tanh(gi[:, 2 * Hd:] + r * gh[:, 2 * Hd:])
    h_new = (1.0 - z) * n + z * h_prev                        # (B, H)

    # ---- output = softmax(out(hidden))  (eval mode) ----
    logits = jnp.dot(h_new, w_out, preferred_element_type=f32) + b_out
    lm = jnp.max(logits, axis=-1, keepdims=True)
    le = jnp.exp(logits - lm)
    probs = le / jnp.sum(le, axis=-1, keepdims=True)

    # ---- single lane-dense output slab: [probs | h_new | attn | pad] ----
    pieces = [probs, h_new, attn]
    pad = out_width - (O + Hd + L)
    if pad > 0:
        pieces.append(jnp.zeros((B, pad), f32))
    return jnp.concatenate(pieces, axis=-1), h_new


# --------------------------------------------------------------------------- #
# Single-step kernel (matches module.forward).                                #
# --------------------------------------------------------------------------- #
def _decoder_step_kernel(word_ref, h_prev_ref, encp_ref, w_slab_ref, w_rnn_ref,
                         vec_ref, out_ref, *, C, E, Hd, O):
    slab, _ = _step_math(word_ref[...], h_prev_ref[...], encp_ref[...],
                         w_slab_ref, w_rnn_ref, vec_ref,
                         C=C, E=E, Hd=Hd, O=O, out_width=out_ref.shape[-1])
    out_ref[...] = slab


# --------------------------------------------------------------------------- #
# Fused T-step kernel: grid=(T,), VMEM-resident weights, VMEM-carried hidden. #
# --------------------------------------------------------------------------- #
def _decoder_fused_kernel(words_ref, h0_ref, encp_ref, w_slab_ref, w_rnn_ref,
                          vec_ref, out_ref, h_carry, *, C, E, Hd, O):
    @pl.when(pl.program_id(0) == 0)
    def _():
        h_carry[...] = h0_ref[...]

    slab, h_new = _step_math(words_ref[0], h_carry[...], encp_ref[...],
                             w_slab_ref, w_rnn_ref, vec_ref,
                             C=C, E=E, Hd=Hd, O=O, out_width=out_ref.shape[-1])
    h_carry[...] = h_new
    out_ref[...] = slab[None, :, :]


# --------------------------------------------------------------------------- #
# Wrappers.                                                                   #
# --------------------------------------------------------------------------- #
def prepare_decoder_params(params):
    """One-time weight folding + packing into a few lane-dense VMEM slabs.

    Call ONCE per model (hoisted out of the per-step path)."""
    f32 = jnp.float32
    Hd = params["w_hh"].shape[0]
    O = params["w_out"].shape[1]
    E = params["embedding"].shape[0]

    w_attn_h = params["w_attn"][:Hd, :]                       # (H, H)  hidden half
    w_attn_e = params["w_attn"][Hd:, :]                       # (C, H)  encoder half
    w_ih_w = params["w_ih"][:Hd, :]                           # (H, 3H) word half
    w_ih_c = params["w_ih"][Hd:, :]                           # (C, 3H) context half
    C = w_ih_c.shape[0]

    # embedding(one-hot) @ word_linear @ GRU word-half folded into a single table.
    w_word_ih = params["embedding"] @ params["w_word"] @ w_ih_w       # (E, 3H)
    b_ih_fold = params["b_ih"] + params["b_word"] @ w_ih_w            # (1, 3H)

    # [attn_hidden | w_hh | w_out] — one (H, 4H+O) slab, lane-aligned splits.
    w_slab = jnp.concatenate([w_attn_h, params["w_hh"], params["w_out"]], axis=1).astype(f32)
    # [word one-hot rows ; context rows] — one (E+C, 3H) GRU-input weight.
    w_rnn = jnp.concatenate([w_word_ih, w_ih_c], axis=0).astype(f32)

    vec_w = _round_up(max(3 * Hd, Hd, O))

    def row(x):
        x = jnp.reshape(x, (1, -1)).astype(f32)
        return jnp.pad(x, ((0, 0), (0, vec_w - x.shape[1])))

    vec_slab = jnp.concatenate(
        [row(params["v"]), row(b_ih_fold), row(params["b_hh"]), row(params["b_out"])],
        axis=0)                                               # (4, vec_w)

    return dict(
        w_slab=w_slab, w_rnn=w_rnn, vec_slab=vec_slab,
        w_attn_e=w_attn_e.astype(f32), b_attn=params["b_attn"].astype(f32),
        dims=dict(Hd=Hd, C=C, E=E, O=O),
    )


def precompute_encoder(encoder_outputs, prep):
    """Step-invariant setup: pack encoder_outputs (batch-major) with its
    attention pre-projection into one lane-dense (B, L, 128) VMEM slab."""
    enc_b = jnp.transpose(encoder_outputs, (1, 0, 2)).astype(jnp.float32)  # (B, L, C)
    B, L, C = enc_b.shape
    Hd = prep["dims"]["Hd"]
    pack_w = _round_up(C + Hd)
    return pl.pallas_call(
        _enc_pack_kernel,
        out_shape=jax.ShapeDtypeStruct((B, L, pack_w), jnp.float32),
        in_specs=[_vmem(), _vmem(), _vmem()],
        out_specs=_vmem(),
    )(enc_b, prep["w_attn_e"], prep["b_attn"])


def bahdanau_attn_decoder_step(word_input, last_hidden, enc_packed, prep):
    """One decode step (== module.forward, eval mode)."""
    d = prep["dims"]
    Hd, C, E, O = d["Hd"], d["C"], d["E"], d["O"]
    B = word_input.shape[0]
    L = enc_packed.shape[1]
    out_w = _round_up(O + Hd + L)

    kernel = functools.partial(_decoder_step_kernel, C=C, E=E, Hd=Hd, O=O)
    slab = pl.pallas_call(
        kernel,
        out_shape=jax.ShapeDtypeStruct((B, out_w), jnp.float32),
        in_specs=[_vmem()] * 6,
        out_specs=_vmem(),
    )(word_input.reshape(B, 1).astype(jnp.int32),
      last_hidden.astype(jnp.float32),
      enc_packed, prep["w_slab"], prep["w_rnn"], prep["vec_slab"])

    out = slab[:, :O]
    hidden = slab[:, O:O + Hd]
    attw = slab[:, O + Hd:O + Hd + L]
    return out, hidden, attw[:, None, :]    # attn as (B, 1, L) to match .unsqueeze(1)


def bahdanau_decode_fused(word_inputs, last_hidden, enc_packed, prep):
    """T teacher-forced decode steps fused into ONE pallas_call with grid=(T,).

    Weights / enc slab stay VMEM-resident (constant index_maps), the hidden
    state is carried in a VMEM scratch across grid steps, and only the packed
    per-step output slab is written back each step.
    word_inputs: (T, B) int32.  Returns (T,B,O) probs, (T,B,H) hidden, (T,B,L) attn.
    """
    d = prep["dims"]
    Hd, C, E, O = d["Hd"], d["C"], d["E"], d["O"]
    T, B = word_inputs.shape
    L = enc_packed.shape[1]
    pack_w = enc_packed.shape[2]
    out_w = _round_up(O + Hd + L)

    kernel = functools.partial(_decoder_fused_kernel, C=C, E=E, Hd=Hd, O=O)
    slabs = pl.pallas_call(
        kernel,
        out_shape=jax.ShapeDtypeStruct((T, B, out_w), jnp.float32),
        grid=(T,),
        in_specs=[
            pl.BlockSpec((1, B, 1), lambda t: (t, 0, 0)),            # per-step word ids
            pl.BlockSpec((B, Hd), lambda t: (0, 0)),                 # h0 (loaded once)
            pl.BlockSpec((B, L, pack_w), lambda t: (0, 0, 0)),       # enc slab (resident)
            pl.BlockSpec(prep["w_slab"].shape, lambda t: (0, 0)),    # weights (resident)
            pl.BlockSpec(prep["w_rnn"].shape, lambda t: (0, 0)),
            pl.BlockSpec(prep["vec_slab"].shape, lambda t: (0, 0)),
        ],
        out_specs=pl.BlockSpec((1, B, out_w), lambda t: (t, 0, 0)),
        scratch_shapes=[pltpu.VMEM((B, Hd), jnp.float32)],           # hidden carry
        compiler_params=pltpu.CompilerParams(dimension_semantics=("arbitrary",)),
    )(word_inputs.reshape(T, B, 1).astype(jnp.int32),
      last_hidden.astype(jnp.float32),
      enc_packed, prep["w_slab"], prep["w_rnn"], prep["vec_slab"])

    out = slabs[:, :, :O]
    hid = slabs[:, :, O:O + Hd]
    attw = slabs[:, :, O + Hd:O + Hd + L]
    return out, hid, attw


def bahdanau_forward(word_input, last_hidden, encoder_outputs, params, prep=None):
    """Convenience wrapper matching the original module signature.
    For decoding loops, hoist prepare_decoder_params/precompute_encoder out."""
    if prep is None:
        prep = prepare_decoder_params(params)
    enc_packed = precompute_encoder(encoder_outputs, prep)
    return bahdanau_attn_decoder_step(word_input, last_hidden, enc_packed, prep)


# --------------------------------------------------------------------------- #
# Parameters & pure-JAX reference.                                            #
# --------------------------------------------------------------------------- #
def init_params(key, hidden_size, embed_size, output_size, onehot_size=(8, 32)):
    onehot = onehot_size[0] + onehot_size[1]
    C = hidden_size + onehot                     # encoder channel dim expected by Attn
    ks = jax.random.split(key, 11)

    def rnd(k, shape, scale):
        return jax.random.normal(k, shape, jnp.float32) * scale

    return dict(
        # nn.Embedding weight is set to eye(embed_size) in the torch module
        embedding=jnp.eye(embed_size, dtype=jnp.float32),
        w_word=rnd(ks[0], (embed_size, hidden_size), 0.05),
        b_word=rnd(ks[1], (1, hidden_size), 0.05),
        w_attn=rnd(ks[2], (hidden_size + C, hidden_size), 0.05),   # 2H + 40 -> H
        b_attn=rnd(ks[3], (1, hidden_size), 0.05),
        v=rnd(ks[4], (1, hidden_size), 1.0 / (hidden_size ** 0.5)),
        w_ih=rnd(ks[5], (hidden_size + C, 3 * hidden_size), 0.05),  # GRU [r|z|n]
        b_ih=rnd(ks[6], (1, 3 * hidden_size), 0.05),
        w_hh=rnd(ks[7], (hidden_size, 3 * hidden_size), 0.05),
        b_hh=rnd(ks[8], (1, 3 * hidden_size), 0.05),
        w_out=rnd(ks[9], (hidden_size, output_size), 0.05),
        b_out=rnd(ks[10], (1, output_size), 0.05),
    )


def _reference(word_input, last_hidden, encoder_outputs, params):
    """Pure-JAX replica of the PyTorch forward (eval mode)."""
    Hd = last_hidden.shape[1]
    wemb = jnp.take(params["embedding"], word_input, axis=0)
    word_embedded = wemb @ params["w_word"] + params["b_word"]
    enc_b = jnp.transpose(encoder_outputs, (1, 0, 2))
    B, L, _ = enc_b.shape
    Hrep = jnp.broadcast_to(last_hidden[:, None, :], (B, L, Hd))
    cat = jnp.concatenate([Hrep, enc_b], axis=-1)
    energy = jnp.tanh(cat @ params["w_attn"] + params["b_attn"])
    scores = jnp.sum(energy * params["v"], axis=-1)
    attn = jax.nn.softmax(scores, axis=1)
    context = jnp.einsum("bl,blc->bc", attn, enc_b)
    rnn_in = jnp.concatenate([word_embedded, context], axis=-1)
    gi = rnn_in @ params["w_ih"] + params["b_ih"]
    gh = last_hidden @ params["w_hh"] + params["b_hh"]
    r = jax.nn.sigmoid(gi[:, :Hd] + gh[:, :Hd])
    z = jax.nn.sigmoid(gi[:, Hd:2 * Hd] + gh[:, Hd:2 * Hd])
    n = jnp.tanh(gi[:, 2 * Hd:] + r * gh[:, 2 * Hd:])
    h_new = (1.0 - z) * n + z * last_hidden
    out = jax.nn.softmax(h_new @ params["w_out"] + params["b_out"], axis=1)
    return out, h_new, attn[:, None, :]


if __name__ == "__main__":
    hidden_size = 32
    embed_size = 32
    output_size = 32          # embedding = eye(embed_size) implies output_size == embed_size
    onehot_size = (8, 32)
    B = 2
    HW = 16                   # H*W spatial positions from the encoder
    T = 8                     # decode steps for the fused path
    C = hidden_size + sum(onehot_size)   # 72

    key = jax.random.PRNGKey(0)
    kp, kw, kh, ke, kt = jax.random.split(key, 5)
    params = init_params(kp, hidden_size, embed_size, output_size, onehot_size)
    word_input = jax.random.randint(kw, (B,), 0, output_size, dtype=jnp.int32)
    last_hidden = jax.random.normal(kh, (B, hidden_size), jnp.float32)
    encoder_outputs = jax.random.normal(ke, (HW, B, C), jnp.float32)

    # one-time setup (hoisted): folded/packed weights + packed encoder slab
    prep = prepare_decoder_params(params)
    enc_packed = precompute_encoder(encoder_outputs, prep)

    # ---- single forward step (== module.forward, eval mode) ----
    out, hidden, attn_w = bahdanau_attn_decoder_step(word_input, last_hidden, enc_packed, prep)
    jax.block_until_ready((out, hidden, attn_w))

    assert out.shape == (B, output_size)
    assert hidden.shape == (B, hidden_size)
    assert attn_w.shape == (B, 1, HW)

    ref_out, ref_hidden, ref_attn = _reference(word_input, last_hidden, encoder_outputs, params)
    np.testing.assert_allclose(np.asarray(out), np.asarray(ref_out), rtol=1e-2, atol=1e-2)
    np.testing.assert_allclose(np.asarray(hidden), np.asarray(ref_hidden), rtol=1e-2, atol=1e-2)
    np.testing.assert_allclose(np.asarray(attn_w), np.asarray(ref_attn), rtol=1e-2, atol=1e-2)

    # ---- fused T-step teacher-forced decode (one pallas_call, grid=(T,)) ----
    words_tf = jax.random.randint(kt, (T, B), 0, output_size, dtype=jnp.int32)
    outs_f, hids_f, attws_f = bahdanau_decode_fused(words_tf, last_hidden, enc_packed, prep)
    jax.block_until_ready((outs_f, hids_f, attws_f))

    assert outs_f.shape == (T, B, output_size)
    assert hids_f.shape == (T, B, hidden_size)
    assert attws_f.shape == (T, B, HW)

    h_ref = last_hidden
    for t in range(T):
        r_out, h_ref, r_attn = _reference(words_tf[t], h_ref, encoder_outputs, params)
        np.testing.assert_allclose(np.asarray(outs_f[t]), np.asarray(r_out), rtol=1e-2, atol=1e-2)
        np.testing.assert_allclose(np.asarray(hids_f[t]), np.asarray(h_ref), rtol=1e-2, atol=1e-2)
        np.testing.assert_allclose(np.asarray(attws_f[t]), np.asarray(r_attn[:, 0, :]),
                                   rtol=1e-2, atol=1e-2)

    print("KERNEL_OK")
</pallas_src>

<mosaic_0001>
module attributes {stable_mosaic.version = 11 : i64} {
  func.func @_enc_pack_kernel(%arg0: memref<2x16x72xf32, #tpu.memory_space<vmem>>, %arg1: memref<72x32xf32, #tpu.memory_space<vmem>>, %arg2: memref<1x32xf32, #tpu.memory_space<vmem>>, %arg3: memref<2x16x128xf32, #tpu.memory_space<vmem>>) attributes {dimension_semantics = [], scalar_prefetch = 0 : i64, scratch_operands = 0 : i64, tpu.core_type = #tpu.core_type<tc>} {
    %c0 = arith.constant 0 : index
    %c0_0 = arith.constant 0 : index
    %c0_1 = arith.constant 0 : index
    %0 = vector.load %arg0[%c0, %c0_0, %c0_1] : memref<2x16x72xf32, #tpu.memory_space<vmem>>, vector<2x16x72xf32>
    %1 = vector.shape_cast %0 : vector<2x16x72xf32> to vector<32x72xf32>
    %c0_2 = arith.constant 0 : index
    %c0_3 = arith.constant 0 : index
    %2 = vector.load %arg1[%c0_2, %c0_3] : memref<72x32xf32, #tpu.memory_space<vmem>>, vector<72x32xf32>
    %cst = arith.constant dense<0.000000e+00> : vector<32x32xf32>
    %3 = tpu.matmul %1, %2, %cst {dimension_numbers = #tpu.dot_dimension_numbers<[1], [0], [0], [1], [0, 0, 1, 1], [], []>} : vector<32x72xf32>, vector<72x32xf32>, vector<32x32xf32> -> vector<32x32xf32>
    %4 = vector.shape_cast %3 : vector<32x32xf32> to vector<2x16x32xf32>
    %c0_4 = arith.constant 0 : index
    %c0_5 = arith.constant 0 : index
    %5 = vector.load %arg2[%c0_4, %c0_5] : memref<1x32xf32, #tpu.memory_space<vmem>>, vector<1x32xf32>
    %6 = vector.shape_cast %5 : vector<1x32xf32> to vector<1x1x32xf32>
    %7 = vector.broadcast %6 : vector<1x1x32xf32> to vector<2x16x32xf32>
    %8 = arith.addf %4, %7 : vector<2x16x32xf32>
    %cst_6 = arith.constant 0.000000e+00 : f32
    %9 = vector.broadcast %cst_6 : f32 to vector<2x16x24xf32>
    %10 = tpu.concatenate %0, %8, %9 in 2 : vector<2x16x72xf32>, vector<2x16x32xf32>, vector<2x16x24xf32> -> vector<2x16x128xf32>
    %c0_7 = arith.constant 0 : index
    %c0_8 = arith.constant 0 : index
    %c0_9 = arith.constant 0 : index
    %11 = vector.load %arg3[%c0_7, %c0_8, %c0_9] : memref<2x16x128xf32, #tpu.memory_space<vmem>>, vector<2x16x128xf32>
    tpu.vector_store %arg3[%c0_7, %c0_8, %c0_9], %10 {strides = array<i32>} : memref<2x16x128xf32, #tpu.memory_space<vmem>>, vector<2x16x128xf32>,
    return
  }
}

</mosaic_0001>

<llo_original>
// kernel: tpu_custom_call.1
$region0: #{tpu_custom_call.1}
  #allocation0 [shape = 'u32[]', space=smem, size = 0x4, offset = 0x4, fixed_abs, tag = 'smem constant byte address 0x4 - core index']
  #allocation1 [shape = 'u32[144,128]{1,0:T(1,128)}', space=vmem, size = 0x12000, scoped, tag = 'internal scratch']
  %s0 = inlined_call_operand.vmem [shape: f32[2,16,72], index: 0, kind: input, shape index: {}]
  %s1 = inlined_call_operand.vmem [shape: f32[72,32], index: 1, kind: input, shape index: {}]
  %s2 = inlined_call_operand.vmem [shape: f32[1,32], index: 2, kind: input, shape index: {}]
  %s3 = inlined_call_operand.hbm [shape: f32[2,16,128], index: 3, kind: output, shape index: {}]
  %s4 = sld [smem:[#allocation0]]
  $region22: #{tpu_custom_call.1} parent=0
    _
  %s6 = ssub.s32 1, %s4
  %s7 = scalar_select 0, %s6, %s4
  $region1: #{tpu_custom_call.1} parent=0
    #allocation2 [shape = 'u8[16384]{0}', space=vmem, size = 0x4000, scoped, tag = 'output window, operand 0, single buffered']
    #allocation3 [shape = 's32[1]{0}', space=sflag, size = 0x4, scoped, tag = 'scoped memory for tpu_custom_call.1']
    %8 = vsyncpa [#allocation3], 0
    // Predicated region
    $region2: #{tpu_custom_call.1} parent=1 // pred_check
      _
    $region3: #{tpu_custom_call.1} parent=1 // pred_check_branch
      %10 = sbr.rel (0) target = $region5
    $region4: #{tpu_custom_call.1} parent=1 // pred_region
      _
    $region5: #{tpu_custom_call.1} parent=1 // pred_fallthru
      _
    // Predicated region
    $region6: #{tpu_custom_call.1} parent=1 // pred_check
      _
    $region7: #{tpu_custom_call.1} parent=1 // pred_check_branch
      %12 = sbr.rel (0) target = $region9
    $region8: #{tpu_custom_call.1} parent=1 // pred_region
      _
    $region9: #{tpu_custom_call.1} parent=1 // pred_fallthru
      _
    // Predicated region
    $region10: #{tpu_custom_call.1} parent=1 // pred_check
      _
    $region11: #{tpu_custom_call.1} parent=1 // pred_check_branch
      %14 = sbr.rel (0) target = $region13
    $region12: #{tpu_custom_call.1} parent=1 // pred_region
      _
    $region13: #{tpu_custom_call.1} parent=1 // pred_fallthru
      _
    %v15 = vld [vmem:[%s0] sm:$0xff]
    %v16 = vld [vmem:[%s0 + $0x8] sm:$0xff]
    %v17 = vld [vmem:[%s0 + $0x10] sm:$0xff]
    %v18 = vld [vmem:[%s0 + $0x18] sm:$0xff]
    %v19 = vld [vmem:[%s1] sm:$0xff]
    %v20 = vld [vmem:[%s1 + $0x8] sm:$0xff]
    %v21 = vld [vmem:[%s1 + $0x10] sm:$0xff]
    %v22 = vld [vmem:[%s1 + $0x18] sm:$0xff]
    %v23 = vld [vmem:[%s1 + $0x20] sm:$0xff]
    %v24 = vld [vmem:[%s1 + $0x28] sm:$0xff]
    %v25 = vld [vmem:[%s1 + $0x30] sm:$0xff]
    %v26 = vld [vmem:[%s1 + $0x38] sm:$0xff]
    %v27 = vld [vmem:[%s1 + $0x40] sm:$0xff]
    %vm28 = vcmask 588800
    %v30 = vsel %vm28, %v15, 0
    %v33 = vsel %vm28, %v16, 0
    %v36 = vsel %vm28, %v17, 0
    %v39 = vsel %vm28, %v18, 0
    %41 = vmatprep.subr.mxu0 0.0
    %42 = vmatpush1.msra.mxu0 %v19
    %43 = vmatprep.subr.mxu0 0.0
    %44 = vmatpush1.msra.mxu0 %v20
    %45 = vmatprep.subr.mxu0 0.0
    %46 = vmatpush1.msra.mxu0 %v21
    %47 = vmatprep.subr.mxu0 0.0
    %48 = vmatpush1.msra.mxu0 %v22
    %49 = vmatprep.subr.mxu0 0.0
    %50 = vmatpush1.msra.mxu0 %v23
    %51 = vmatprep.subr.mxu0 0.0
    %52 = vmatpush1.msra.mxu0 %v24
    %53 = vmatprep.subr.mxu0 0.0
    %54 = vmatpush1.msra.mxu0 %v25
    %55 = vmatprep.subr.mxu0 0.0
    %56 = vmatpush1.msra.mxu0 %v26
    %57 = vmatprep.subr.mxu0 0.0
    %58 = vmatpush1.msra.mxu0 %v27
    %59 = vmatprep.subr.mxu0 0.0
    %60 = vmatpush1.msra.mxu0 0.0
    %61 = vmatprep.subr.mxu0 0.0
    %62 = vmatpush1.msra.mxu0 0.0
    %63 = vmatprep.subr.mxu0 0.0
    %64 = vmatpush1.msra.mxu0 0.0
    %65 = vmatprep.subr.mxu0 0.0
    %66 = vmatpush1.msra.mxu0 0.0
    %67 = vmatprep.subr.mxu0 0.0
    %68 = vmatpush1.msra.mxu0 0.0
    %69 = vmatprep.subr.mxu0 0.0
    %70 = vmatpush1.msra.mxu0 0.0
    %71 = vmatprep.subr.mxu0 0.0
    %72 = vmatpush1.msra.mxu0 0.0
    %73 = vmatprep.subr.mxu0 0.0
    %74 = vmatpush1.msra.mxu0 0.0
    %75 = vmatprep.subr.mxu0 0.0
    %76 = vmatpush1.msra.mxu0 0.0
    %77 = vmatprep.subr.mxu0 0.0
    %78 = vmatpush1.msra.mxu0 0.0
    %79 = vmatprep.subr.mxu0 0.0
    %80 = vmatpush1.msra.mxu0 0.0
    %81 = vmatprep.subr.mxu0 0.0
    %82 = vmatpush1.msra.mxu0 0.0
    %83 = vmatprep.subr.mxu0 0.0
    %84 = vmatpush1.msra.mxu0 0.0
    %85 = vmatprep.subr.mxu0 0.0
    %86 = vmatpush1.msra.mxu0 0.0
    %87 = vmatprep.subr.mxu0 0.0
    %88 = vmatpush1.msra.mxu0 0.0
    %89 = vmatprep.subr.mxu0 0.0
    %90 = vmatpush1.msra.mxu0 0.0
    %91 = vmatprep.subr.mxu0 0.0
    %92 = vmatpush1.msra.mxu0 0.0
    %93 = vmatprep.subr.mxu0 0.0
    %94 = vmatpush1.msra.mxu0 0.0
    %95 = vmatprep.subr.mxu0 0.0
    %96 = vmatpush1.msra.mxu0 0.0
    %97 = vmatprep.subr.mxu0 0.0
    %98 = vmatpush1.msra.mxu0 0.0
    %99 = vmatprep.subr.mxu0 0.0
    %100 = vmatpush1.msra.mxu0 0.0
    %101 = vmatprep.subr.mxu0 0.0
    %102 = vmatpush1.msra.mxu0 0.0
    %103 = vmatprep.subr.mxu0 0.0
    %104 = vmatpush1.msra.mxu0 0.0
    %105 = vmatprep.mubr.f32.mxu0 0.0
    %106 = vmatmul.mubr.f32.gmra.mrb[0].mxu0 %v30
    %v107 = vpop.f32.mrb[0].mxu0
    %v108 = vadd.f32 0.0, %v107
    %v109 = vpop.f32.mrb[0].mxu0
    %110 = vmatprep.mubr.f32.mxu0 0.0
    %111 = vmatmul.mubr.f32.gmra.mrb[0].mxu0 %v33
    %v112 = vpop.f32.mrb[0].mxu0
    %v113 = vadd.f32 0.0, %v112
    %v114 = vpop.f32.mrb[0].mxu0
    %115 = vmatprep.mubr.f32.mxu0 0.0
    %116 = vmatmul.mubr.f32.gmra.mrb[0].mxu0 %v36
    %v117 = vpop.f32.mrb[0].mxu0
    %v118 = vadd.f32 0.0, %v117
    %v119 = vpop.f32.mrb[0].mxu0
    %120 = vmatprep.mubr.f32.mxu0 0.0
    %121 = vmatmul.mubr.f32.gmra.mrb[0].mxu0 %v39
    %v122 = vpop.f32.mrb[0].mxu0
    %v123 = vadd.f32 0.0, %v122
    %v124 = vpop.f32.mrb[0].mxu0
    %125 = vdwg.mxu0
    %v126 = vld [vmem:[%s2] sm:$0x1]
    %v128 = vlaneseq
    %v129 = vshrl.u32 %v128, 7
    %v130 = vsub.s32 0, %v129
    %v131 = vrot.slane %v126, %v130
    %v133 = vadd.f32 %v108, %v131
    %v134 = vadd.f32 %v113, %v131
    %v135 = vadd.f32 %v118, %v131
    %v136 = vadd.f32 %v123, %v131
    %141 = vrot.lane.b32.xlu0 %v133, 72
    %v142 = vpop.permute.xlu0 %141
    %143 = vrot.lane.b32.xlu0 %v134, 72
    %v144 = vpop.permute.xlu0 %143
    %145 = vrot.lane.b32.xlu0 %v135, 72
    %v146 = vpop.permute.xlu0 %145
    %147 = vrot.lane.b32.xlu0 %v136, 72
    %v148 = vpop.permute.xlu0 %147
    %v153 = vsel %vm28, %v15, %v142
    %v154 = vsel %vm28, %v16, %v144
    %v155 = vsel %vm28, %v17, %v146
    %v156 = vsel %vm28, %v18, %v148
    %vm157 = vcmask 850944
    %v158 = vsel %vm157, %v153, 0.0
    %v159 = vsel %vm157, %v154, 0.0
    %v160 = vsel %vm157, %v155, 0.0
    %v161 = vsel %vm157, %v156, 0.0
    %162 = vst [vmem:[#allocation2] sm:$0xff] %v158
    %163 = vst [vmem:[#allocation2 + $0x8] sm:$0xff] %v159
    %164 = vst [vmem:[#allocation2 + $0x10] sm:$0xff] %v160
    %165 = vst [vmem:[#allocation2 + $0x18] sm:$0xff] %v161
    // Predicated region
    $region14: #{tpu_custom_call.1} parent=1 // pred_check
      _
    $region15: #{tpu_custom_call.1} parent=1 // pred_check_branch
      %167 = sbr.rel (0) target = $region17
    $region16: #{tpu_custom_call.1} parent=1 // pred_region
      %s169 = ssub.s32 512, 512
      %170 = vsyncadd [#allocation3], %s169
      %s171 = sshll.u32 [#allocation2], 4
      %s172 = int_to_ptr.vmem [resolvable:$true] %s171
      %177 = dma.vmem_to_hbm [thread:$0]  %s172, 512, %s3, [#allocation3], 128, 128, 8
    $region17: #{tpu_custom_call.1} parent=1 // pred_fallthru
      _
    // Predicated region
    $region18: #{tpu_custom_call.1} parent=1 // pred_check
      _
    $region19: #{tpu_custom_call.1} parent=1 // pred_check_branch
      %179 = sbr.rel (0) target = $region21
    $region20: #{tpu_custom_call.1} parent=1 // pred_region
      %180 = dma.done [#allocation3], 512
    $region21: #{tpu_custom_call.1} parent=1 // pred_fallthru
      _
    %181 = vsyncpa [#allocation3], 1

</llo_original>
